<compile_context>
chip_gen: v7x
topology: tpu7x:2x2x1
jax: 0.10.0
libtpu: 0.0.40
codegen_flags: <defaults>
</compile_context>

<pallas_src>
import math

import jax
import jax.numpy as jnp
from jax.experimental import pallas as pl
from jax.experimental.pallas import tpu as pltpu

_MIB = 1024 * 1024


# ---------------------------------------------------------------------------
# Pallas kernel: fused concat + 1x1-conv (matmul) + folded BatchNorm bias
# ---------------------------------------------------------------------------
def _make_fused_kernel(n_inputs, compute_dtype):
    def kernel(*refs):
        # refs layout: x_0..x_{n-1}, w_0..w_{n-1}, bias, out
        x_refs = refs[:n_inputs]
        w_refs = refs[n_inputs:2 * n_inputs]
        bias_ref = refs[2 * n_inputs]          # (Cout, 1) f32
        o_ref = refs[2 * n_inputs + 1]         # (1, Cout, THW)

        # w_i: (Cout, C_i) bf16, x_i: (1, C_i, THW); cast-to-bf16 happens here
        # (VPU, free under the HBM roofline) so f32 inputs need no cast pass.
        acc = jnp.dot(w_refs[0][...],
                      x_refs[0][0].astype(compute_dtype),
                      preferred_element_type=jnp.float32)
        for i in range(1, n_inputs):
            acc = acc + jnp.dot(w_refs[i][...],
                                x_refs[i][0].astype(compute_dtype),
                                preferred_element_type=jnp.float32)
        # folded-BN bias broadcast over lanes; lane-dense store.
        o_ref[0] = (acc + bias_ref[...]).astype(o_ref.dtype)

    return kernel


# ---------------------------------------------------------------------------
# Resize glue (no gather for integer scales)
# ---------------------------------------------------------------------------
def _upsample_nearest_int(x, s):
    """Nearest upsample by integer factor s via broadcast+reshape (no gather)."""
    N, C, H, W = x.shape
    y = jnp.broadcast_to(x[:, :, :, None, :, None], (N, C, H, s, W, s))
    return y.reshape(N, C, H * s, W * s)


def _resize_nearest(x, scale):
    """PyTorch F.interpolate(mode='nearest', scale_factor=scale), NCHW."""
    N, C, H, W = x.shape
    Ho = int(math.floor(H * scale))
    Wo = int(math.floor(W * scale))
    if Ho == H and Wo == W:
        return x
    s_int = int(round(scale))
    if s_int >= 1 and abs(scale - s_int) < 1e-9:
        return _upsample_nearest_int(x, s_int)      # plain copies / broadcasts
    # TODO(synk): non-integer scale factors fall back to an XLA gather pass.
    hi = jnp.minimum(jnp.floor(jnp.arange(Ho) / scale).astype(jnp.int32), H - 1)
    wi = jnp.minimum(jnp.floor(jnp.arange(Wo) / scale).astype(jnp.int32), W - 1)
    return x[:, :, hi[:, None], wi[None, :]]


# ---------------------------------------------------------------------------
# Generation-aware sizing
# ---------------------------------------------------------------------------
def _generation_defaults():
    """Returns (default_thw, vmem_limit_cap_bytes) for this TPU generation."""
    vmem_cap = 64 * _MIB
    try:
        vmem_cap = int(getattr(pltpu.get_tpu_info(), "vmem_capacity_bytes",
                               vmem_cap))
    except Exception:
        pass
    if vmem_cap >= 96 * _MIB:          # v5e / v6e: 128 MiB physical VMEM
        return 2048, 96 * _MIB
    return 1024, 44 * _MIB             # v7x: 64 MiB physical VMEM


def _vmem_footprint(c_list, in_itemsizes, Cout, thw, w_itemsize, out_itemsize):
    b = 0
    for c, isz in zip(c_list, in_itemsizes):
        b += 2 * c * thw * isz          # double-buffered input tiles
        b += Cout * c * w_itemsize      # resident weight slice
    b += Cout * 4                       # bias (f32)
    b += 2 * Cout * thw * out_itemsize  # double-buffered output tiles
    return b


# ---------------------------------------------------------------------------
# Forward wrapper
# ---------------------------------------------------------------------------
def transition_layer(xs, scale_factors, conv_w, bn_gamma, bn_beta,
                     bn_mean, bn_var, eps=1e-5, compute_dtype=jnp.bfloat16,
                     out_dtype=jnp.bfloat16, thw_target=None):
    """xs: list of NCHW arrays; conv_w: (Cout, Cin, 1, 1). Returns NCHW."""
    n_inputs = len(xs)
    assert n_inputs == len(scale_factors)

    default_thw, vmem_cap = _generation_defaults()
    if thw_target is None:
        thw_target = default_thw

    # Resize: identity-scale inputs are passed straight through (cast happens
    # in-kernel); scaled inputs are upsampled via broadcast+reshape with the
    # bf16 cast fused into the same XLA pass.
    x_parts, c_list = [], []
    N = Ho = Wo = None
    for x, s in zip(xs, scale_factors):
        n_, c, h, w = x.shape
        ho, wo = int(math.floor(h * s)), int(math.floor(w * s))
        if ho == h and wo == w:
            r = x                                      # no extra HBM pass
        else:
            r = _resize_nearest(x.astype(compute_dtype), s)
        if N is None:
            N, Ho, Wo = n_, ho, wo
        assert (n_, ho, wo) == (N, Ho, Wo), "resized inputs must align"
        x_parts.append(r.reshape(n_, c, ho * wo))      # free reshape (NCHW)
        c_list.append(int(c))

    HW = Ho * Wo
    Cin = sum(c_list)
    Cout = int(conv_w.shape[0])

    # Fold eval-mode BatchNorm: scale into the weight, bias added in-kernel.
    scale = bn_gamma / jnp.sqrt(bn_var + eps)                        # (Cout,)
    bias = (bn_beta - bn_mean * scale).reshape(Cout, 1).astype(jnp.float32)
    w_scaled = conv_w.reshape(Cout, Cin) * scale[:, None]            # f32

    # Per-source weight slices (fuses the channel concat into the kernel).
    w_parts, off = [], 0
    for c in c_list:
        w_parts.append(w_scaled[:, off:off + c].astype(compute_dtype))
        off += c

    # Spatial tile: lane-dense, >=2 parallel grid steps, fits the VMEM cap.
    in_itemsizes = [jnp.dtype(p.dtype).itemsize for p in x_parts]
    w_item = jnp.dtype(compute_dtype).itemsize
    out_item = jnp.dtype(out_dtype).itemsize

    thw = HW if HW <= thw_target else max(128, (thw_target // 128) * 128)
    while N * ((HW + thw - 1) // thw) < 2 and thw > 128:   # keep both TCs busy
        thw = max(128, thw // 2)
    while thw > 128:                                       # fit under VMEM cap
        foot = _vmem_footprint(c_list, in_itemsizes, Cout, thw, w_item, out_item)
        if foot + foot // 4 <= vmem_cap:
            break
        thw = max(128, thw // 2)

    grid = (N, (HW + thw - 1) // thw)
    foot = _vmem_footprint(c_list, in_itemsizes, Cout, thw, w_item, out_item)
    vmem_limit = int(min(vmem_cap, max(32 * _MIB, 2 * foot)))

    in_specs = (
        [pl.BlockSpec((1, c, thw), lambda n, t: (n, 0, t)) for c in c_list] +
        [pl.BlockSpec((Cout, c), lambda n, t: (0, 0)) for c in c_list] +
        [pl.BlockSpec((Cout, 1), lambda n, t: (0, 0))]
    )
    out_spec = pl.BlockSpec((1, Cout, thw), lambda n, t: (n, 0, t))

    bytes_accessed = (sum(N * c * HW * isz
                          for c, isz in zip(c_list, in_itemsizes))
                      + Cout * Cin * w_item + Cout * 4
                      + N * Cout * HW * out_item)
    cost = pl.CostEstimate(flops=2 * N * Cout * Cin * HW,
                           transcendentals=0,
                           bytes_accessed=int(bytes_accessed))

    y = pl.pallas_call(
        _make_fused_kernel(n_inputs, compute_dtype),
        out_shape=jax.ShapeDtypeStruct((N, Cout, HW), out_dtype),
        grid=grid,
        in_specs=in_specs,
        out_specs=out_spec,
        compiler_params=pltpu.CompilerParams(
            dimension_semantics=("parallel", "parallel"),
            vmem_limit_bytes=vmem_limit),
        cost_estimate=cost,
    )(*x_parts, *w_parts, bias)

    return y.reshape(N, Cout, Ho, Wo)                                # NCHW


# ---------------------------------------------------------------------------
# Pure-JAX reference (f32, gather-based resize) for a sanity check
# ---------------------------------------------------------------------------
def _resize_nearest_ref(x, scale):
    N, C, H, W = x.shape
    Ho = int(math.floor(H * scale))
    Wo = int(math.floor(W * scale))
    if Ho == H and Wo == W:
        return x
    hi = jnp.minimum(jnp.floor(jnp.arange(Ho) / scale).astype(jnp.int32), H - 1)
    wi = jnp.minimum(jnp.floor(jnp.arange(Wo) / scale).astype(jnp.int32), W - 1)
    return x[:, :, hi[:, None], wi[None, :]]


def transition_layer_ref(xs, scale_factors, conv_w, bn_gamma, bn_beta,
                         bn_mean, bn_var, eps=1e-5):
    resized = [_resize_nearest_ref(xi, s) for xi, s in zip(xs, scale_factors)]
    concat = jnp.concatenate(resized, axis=1)
    Cout, Cin = conv_w.shape[:2]
    y = jnp.einsum("nchw,oc->nohw", concat, conv_w.reshape(Cout, Cin))
    scale = (bn_gamma / jnp.sqrt(bn_var + eps)).reshape(1, Cout, 1, 1)
    bias = (bn_beta - bn_mean * bn_gamma / jnp.sqrt(bn_var + eps)
            ).reshape(1, Cout, 1, 1)
    return y * scale + bias


if __name__ == "__main__":
    key = jax.random.PRNGKey(0)
    k1, k2, kw = jax.random.split(key, 3)

    # TransitionLayer(num_input=2, scale_facotrs=[1.0, 2.0],
    #                 in_features=4, out_features=8)
    scale_factors = [1.0, 2.0]
    in_features, out_features = 4, 8

    # Two inputs whose channel counts sum to in_features and whose resized
    # spatial dims match (16x16 and 8x8*2 -> both 16x16 after interpolate).
    x1 = jax.random.normal(k1, (2, 2, 16, 16), dtype=jnp.float32)
    x2 = jax.random.normal(k2, (2, 2, 8, 8), dtype=jnp.float32)

    # Deterministic synthetic parameters (no checkpoint load).
    conv_w = jax.random.normal(kw, (out_features, in_features, 1, 1),
                               dtype=jnp.float32) * 0.1
    bn_gamma = 1.0 + 0.1 * jnp.arange(out_features, dtype=jnp.float32)
    bn_beta = 0.01 * jnp.arange(out_features, dtype=jnp.float32)
    bn_mean = 0.05 * jnp.arange(out_features, dtype=jnp.float32)
    bn_var = 1.0 + 0.02 * jnp.arange(out_features, dtype=jnp.float32)

    out = transition_layer([x1, x2], scale_factors, conv_w,
                           bn_gamma, bn_beta, bn_mean, bn_var)
    out = jax.block_until_ready(out)

    ref = transition_layer_ref([x1, x2], scale_factors, conv_w,
                               bn_gamma, bn_beta, bn_mean, bn_var)
    assert out.shape == (2, out_features, 16, 16)
    # bf16 matmul operands + bf16 output (f32 accumulation) -> loose tolerance.
    assert jnp.allclose(out.astype(jnp.float32), ref, atol=2e-2, rtol=2e-2)

    print("KERNEL_OK")
</pallas_src>

<mosaic_0001>
module attributes {stable_mosaic.version = 11 : i64} {
  func.func @kernel(%arg0: i32, %arg1: i32, %arg2: memref<1x2x256xf32, #tpu.memory_space<vmem>>, %arg3: memref<1x2x256xbf16, #tpu.memory_space<vmem>>, %arg4: memref<8x2xbf16, #tpu.memory_space<vmem>>, %arg5: memref<8x2xbf16, #tpu.memory_space<vmem>>, %arg6: memref<8x1xf32, #tpu.memory_space<vmem>>, %arg7: memref<1x8x256xbf16, #tpu.memory_space<vmem>>) attributes {dimension_semantics = [#tpu.dimension_semantics<parallel>, #tpu.dimension_semantics<parallel>], iteration_bounds = array<i64: 2, 1>, scalar_prefetch = 0 : i64, scratch_operands = 0 : i64, tpu.core_type = #tpu.core_type<tc>, window_params = [{transform_indices = @transform_0, window_bounds = array<i64: 1, 2, 256>}, {transform_indices = @transform_1, window_bounds = array<i64: 1, 2, 256>}, {pipeline_mode = #tpu.pipeline_mode<synchronous>, transform_indices = @transform_2, window_bounds = array<i64: 8, 2>}, {pipeline_mode = #tpu.pipeline_mode<synchronous>, transform_indices = @transform_3, window_bounds = array<i64: 8, 2>}, {pipeline_mode = #tpu.pipeline_mode<synchronous>, transform_indices = @transform_4, window_bounds = array<i64: 8, 1>}, {transform_indices = @transform_5, window_bounds = array<i64: 1, 8, 256>}]} {
    %c0 = arith.constant 0 : index
    %c0_0 = arith.constant 0 : index
    %0 = vector.load %arg4[%c0, %c0_0] : memref<8x2xbf16, #tpu.memory_space<vmem>>, vector<8x2xbf16>
    %c0_1 = arith.constant 0 : index
    %c0_2 = arith.constant 0 : index
    %c0_3 = arith.constant 0 : index
    %1 = vector.load %arg2[%c0_1, %c0_2, %c0_3] : memref<1x2x256xf32, #tpu.memory_space<vmem>>, vector<1x2x256xf32>
    %2 = vector.shape_cast %1 : vector<1x2x256xf32> to vector<2x256xf32>
    %3 = arith.truncf %2 : vector<2x256xf32> to vector<2x256xbf16>
    %cst = arith.constant dense<0.000000e+00> : vector<8x256xf32>
    %4 = tpu.matmul %0, %3, %cst {dimension_numbers = #tpu.dot_dimension_numbers<[1], [0], [0], [1], [0, 0, 1, 1], [], []>} : vector<8x2xbf16>, vector<2x256xbf16>, vector<8x256xf32> -> vector<8x256xf32>
    %c0_4 = arith.constant 0 : index
    %c0_5 = arith.constant 0 : index
    %5 = vector.load %arg5[%c0_4, %c0_5] : memref<8x2xbf16, #tpu.memory_space<vmem>>, vector<8x2xbf16>
    %c0_6 = arith.constant 0 : index
    %c0_7 = arith.constant 0 : index
    %c0_8 = arith.constant 0 : index
    %6 = vector.load %arg3[%c0_6, %c0_7, %c0_8] : memref<1x2x256xbf16, #tpu.memory_space<vmem>>, vector<1x2x256xbf16>
    %7 = vector.shape_cast %6 : vector<1x2x256xbf16> to vector<2x256xbf16>
    %cst_9 = arith.constant dense<0.000000e+00> : vector<8x256xf32>
    %8 = tpu.matmul %5, %7, %cst_9 {dimension_numbers = #tpu.dot_dimension_numbers<[1], [0], [0], [1], [0, 0, 1, 1], [], []>} : vector<8x2xbf16>, vector<2x256xbf16>, vector<8x256xf32> -> vector<8x256xf32>
    %9 = arith.addf %4, %8 : vector<8x256xf32>
    %c0_10 = arith.constant 0 : index
    %c0_11 = arith.constant 0 : index
    %10 = vector.load %arg6[%c0_10, %c0_11] : memref<8x1xf32, #tpu.memory_space<vmem>>, vector<8x1xf32>
    %11 = vector.broadcast %10 : vector<8x1xf32> to vector<8x256xf32>
    %12 = arith.addf %9, %11 : vector<8x256xf32>
    %13 = arith.truncf %12 : vector<8x256xf32> to vector<8x256xbf16>
    %c0_12 = arith.constant 0 : index
    %c0_13 = arith.constant 0 : index
    %c0_14 = arith.constant 0 : index
    %14 = vector.load %arg7[%c0_12, %c0_13, %c0_14] : memref<1x8x256xbf16, #tpu.memory_space<vmem>>, vector<1x8x256xbf16>
    %15 = vector.shape_cast %14 : vector<1x8x256xbf16> to vector<8x256xbf16>
    %16 = vector.shape_cast %13 : vector<8x256xbf16> to vector<1x8x256xbf16>
    tpu.vector_store %arg7[%c0_12, %c0_13, %c0_14], %16 {strides = array<i32>} : memref<1x8x256xbf16, #tpu.memory_space<vmem>>, vector<1x8x256xbf16>,
    return
  }
  func.func @transform_0(%arg0: i32, %arg1: i32) -> (i32, i32, i32) {
    %c0_i32 = arith.constant 0 : i32
    %c0_i32_0 = arith.constant 0 : i32
    return %arg0, %c0_i32, %arg1 : i32, i32, i32
  }
  func.func @transform_1(%arg0: i32, %arg1: i32) -> (i32, i32, i32) {
    %c0_i32 = arith.constant 0 : i32
    %c0_i32_0 = arith.constant 0 : i32
    return %arg0, %c0_i32, %arg1 : i32, i32, i32
  }
  func.func @transform_2(%arg0: i32, %arg1: i32) -> (i32, i32) {
    %c0_i32 = arith.constant 0 : i32
    %c0_i32_0 = arith.constant 0 : i32
    %c0_i32_1 = arith.constant 0 : i32
    return %c0_i32, %c0_i32_0 : i32, i32
  }
  func.func @transform_3(%arg0: i32, %arg1: i32) -> (i32, i32) {
    %c0_i32 = arith.constant 0 : i32
    %c0_i32_0 = arith.constant 0 : i32
    %c0_i32_1 = arith.constant 0 : i32
    return %c0_i32, %c0_i32_0 : i32, i32
  }
  func.func @transform_4(%arg0: i32, %arg1: i32) -> (i32, i32) {
    %c0_i32 = arith.constant 0 : i32
    %c0_i32_0 = arith.constant 0 : i32
    %c0_i32_1 = arith.constant 0 : i32
    return %c0_i32, %c0_i32_0 : i32, i32
  }
  func.func @transform_5(%arg0: i32, %arg1: i32) -> (i32, i32, i32) {
    %c0_i32 = arith.constant 0 : i32
    %c0_i32_0 = arith.constant 0 : i32
    return %arg0, %c0_i32, %arg1 : i32, i32, i32
  }
}

</mosaic_0001>

<llo_original>
// kernel: tpu_custom_call.1
$region0: #{tpu_custom_call.1}
  #allocation0 [shape = 'u32[]', space=smem, size = 0x4, offset = 0x4, fixed_abs, tag = 'smem constant byte address 0x4 - core index']
  #allocation1 [shape = 'u32[144,128]{1,0:T(1,128)}', space=vmem, size = 0x12000, scoped, tag = 'internal scratch']
  %s0 = inlined_call_operand.vmem [shape: f32[2,2,256], index: 0, kind: input, shape index: {}]
  %s1 = inlined_call_operand.vmem [shape: bf16[2,2,256], index: 1, kind: input, shape index: {}]
  %s2 = inlined_call_operand.vmem [shape: bf16[8,2], index: 2, kind: input, shape index: {}]
  %s3 = inlined_call_operand.vmem [shape: bf16[8,2], index: 3, kind: input, shape index: {}]
  %s4 = inlined_call_operand.vmem [shape: f32[8,1], index: 4, kind: input, shape index: {}]
  %s5 = inlined_call_operand.hbm [shape: bf16[2,8,256], index: 5, kind: output, shape index: {}]
  %s6 = sld [smem:[#allocation0]]
  $region53: #{tpu_custom_call.1} parent=0
    _
  %s8 = ssub.s32 1, %s6
  %s9 = scalar_select 0, %s8, %s6
  $region1: #{tpu_custom_call.1} parent=0
    #allocation2 [shape = 'u8[8192]{0}', space=vmem, size = 0x2000, scoped, tag = 'output window, operand 0']
    #allocation3 [shape = 's32[2]{0}', space=sflag, size = 0x8, scoped, tag = 'scoped memory for tpu_custom_call.1']
    %10 = vsyncpa [#allocation3], 0
    %s11 = scalar_lea.sflag [#allocation3], 1
    %12 = vsyncpa %s11, 0
    loop: start=0, step=1, limit=4
    $region2: #{tpu_custom_call.1} parent=1 // loop_pre_header
      _
    $region3: #{tpu_custom_call.1} parent=1 // loop_header
      %s14 = sphi 0, %s18
      %p15 = scmp.ge.s32.totalorder %s14, 4
      %s21 = sphi 0, %s33
      %s22 = sphi 0, %s29
      %s23 = sphi 0, %s21
      %s24 = sphi 0, %s22
      %s25 = sphi 0, %s23
      %s26 = sphi 0, %s24
      %s38 = sphi 0, %s40
      %s41 = sphi 0, %s38
      %s42 = sphi 0, %s41
      %s58 = sphi 0, %s42
      %s66 = sphi 0, %s68
      %s69 = sphi 0, %s66
      %s70 = sphi 0, %s69
      %s86 = sphi 0, %s70
      %s90 = sphi 0, %s90
      %s92 = sphi 0, %s90
      %s93 = sphi 0, %s92
      %s107 = sphi 0, %s93
      %s111 = sphi 0, %s111
      %s113 = sphi 0, %s111
      %s114 = sphi 0, %s113
      %s128 = sphi 0, %s114
      %s132 = sphi 0, %s132
      %s134 = sphi 0, %s132
      %s135 = sphi 0, %s134
      %s149 = sphi 0, %s135
      %s157 = sphi 0, %s159
      %s160 = sphi 0, %s157
      %s161 = sphi 0, %s160
      %s177 = sphi 0, %s161
    $region4: #{tpu_custom_call.1} parent=1 // loop_header_branch
      %17 = sbr.rel (%p15) target = $region8
    $region5: #{tpu_custom_call.1} parent=1 // loop_body
      %s19 = ssub.s32 %s14, 1
      %s20 = ssub.s32 %s14, 2
      %s27 = sadd.s32 1, %s22
      %p28 = scmp.ge.s32.totalorder %s27, 1
      %s29 = scalar_select %p28, 0, %s27
      %s30 = sadd.s32 1, %s21
      %s31 = scalar_select %p28, %s30, %s21
      %p32 = scmp.ge.s32.totalorder %s31, 2
      %s33 = scalar_select %p32, 0, %s31
      %s34 = ssub.s32 %s21, %s33
      %s35 = ssub.s32 %s22, %s29
      %s36 = sor.u32 %s34, %s35
      %p37 = scmp.eq.s32.totalorder %s36, 0
      %s39 = sadd.s32 %s38, 1
      %s40 = scalar_select %p37, %s38, %s39
      %p43 = pneg %p37
      %p44 = scmp.eq.s32.totalorder %s14, 1
      %p45 = por %p43, %p44
      %p46 = scmp.ne.s32.totalorder %s38, %s41
      %p47 = scmp.eq.s32.totalorder %s14, 0
      %p48 = por %p46, %p47
      %p49 = scmp.ne.s32.totalorder %s38, %s41
      %p50 = scmp.eq.s32.totalorder %s19, 1
      %p51 = por %p49, %p50
      %p52 = scmp.ne.s32.totalorder %s41, %s42
      %p53 = scmp.eq.s32.totalorder %s19, 0
      %p54 = por %p52, %p53
      %p55 = scmp.ne.s32.totalorder %s41, %s42
      %p56 = scmp.eq.s32.totalorder %s20, 1
      %p57 = por %p55, %p56
      %p59 = scmp.ne.s32.totalorder %s42, %s58
      %p60 = scmp.eq.s32.totalorder %s20, 0
      %p61 = por %p59, %p60
      %s62 = ssub.s32 %s21, %s33
      %s63 = ssub.s32 %s22, %s29
      %s64 = sor.u32 %s62, %s63
      %p65 = scmp.eq.s32.totalorder %s64, 0
      %s67 = sadd.s32 %s66, 1
      %s68 = scalar_select %p65, %s66, %s67
      %p71 = pneg %p65
      %p72 = scmp.eq.s32.totalorder %s14, 1
      %p73 = por %p71, %p72
      %p74 = scmp.ne.s32.totalorder %s66, %s69
      %p75 = scmp.eq.s32.totalorder %s14, 0
      %p76 = por %p74, %p75
      %p77 = scmp.ne.s32.totalorder %s66, %s69
      %p78 = scmp.eq.s32.totalorder %s19, 1
      %p79 = por %p77, %p78
      %p80 = scmp.ne.s32.totalorder %s69, %s70
      %p81 = scmp.eq.s32.totalorder %s19, 0
      %p82 = por %p80, %p81
      %p83 = scmp.ne.s32.totalorder %s69, %s70
      %p84 = scmp.eq.s32.totalorder %s20, 1
      %p85 = por %p83, %p84
      %p87 = scmp.ne.s32.totalorder %s70, %s86
      %p88 = scmp.eq.s32.totalorder %s20, 0
      %p89 = por %p87, %p88
      %s91 = sadd.s32 %s90, 1
      %p94 = scmp.eq.s32.totalorder %s14, 1
      %p95 = scmp.ne.s32.totalorder %s90, %s92
      %p96 = scmp.eq.s32.totalorder %s14, 0
      %p97 = por %p95, %p96
      %p98 = scmp.ne.s32.totalorder %s90, %s92
      %p99 = scmp.eq.s32.totalorder %s19, 1
      %p100 = por %p98, %p99
      %p101 = scmp.ne.s32.totalorder %s92, %s93
      %p102 = scmp.eq.s32.totalorder %s19, 0
      %p103 = por %p101, %p102
      %p104 = scmp.ne.s32.totalorder %s92, %s93
      %p105 = scmp.eq.s32.totalorder %s20, 1
      %p106 = por %p104, %p105
      %p108 = scmp.ne.s32.totalorder %s93, %s107
      %p109 = scmp.eq.s32.totalorder %s20, 0
      %p110 = por %p108, %p109
      %s112 = sadd.s32 %s111, 1
      %p115 = scmp.eq.s32.totalorder %s14, 1
      %p116 = scmp.ne.s32.totalorder %s111, %s113
      %p117 = scmp.eq.s32.totalorder %s14, 0
      %p118 = por %p116, %p117
      %p119 = scmp.ne.s32.totalorder %s111, %s113
      %p120 = scmp.eq.s32.totalorder %s19, 1
      %p121 = por %p119, %p120
      %p122 = scmp.ne.s32.totalorder %s113, %s114
      %p123 = scmp.eq.s32.totalorder %s19, 0
      %p124 = por %p122, %p123
      %p125 = scmp.ne.s32.totalorder %s113, %s114
      %p126 = scmp.eq.s32.totalorder %s20, 1
      %p127 = por %p125, %p126
      %p129 = scmp.ne.s32.totalorder %s114, %s128
      %p130 = scmp.eq.s32.totalorder %s20, 0
      %p131 = por %p129, %p130
      %s133 = sadd.s32 %s132, 1
      %p136 = scmp.eq.s32.totalorder %s14, 1
      %p137 = scmp.ne.s32.totalorder %s132, %s134
      %p138 = scmp.eq.s32.totalorder %s14, 0
      %p139 = por %p137, %p138
      %p140 = scmp.ne.s32.totalorder %s132, %s134
      %p141 = scmp.eq.s32.totalorder %s19, 1
      %p142 = por %p140, %p141
      %p143 = scmp.ne.s32.totalorder %s134, %s135
      %p144 = scmp.eq.s32.totalorder %s19, 0
      %p145 = por %p143, %p144
      %p146 = scmp.ne.s32.totalorder %s134, %s135
      %p147 = scmp.eq.s32.totalorder %s20, 1
      %p148 = por %p146, %p147
      %p150 = scmp.ne.s32.totalorder %s135, %s149
      %p151 = scmp.eq.s32.totalorder %s20, 0
      %p152 = por %p150, %p151
      %s153 = ssub.s32 %s21, %s33
      %s154 = ssub.s32 %s22, %s29
      %s155 = sor.u32 %s153, %s154
      %p156 = scmp.eq.s32.totalorder %s155, 0
      %s158 = sadd.s32 %s157, 1
      %s159 = scalar_select %p156, %s157, %s158
      %p162 = pneg %p156
      %p163 = scmp.eq.s32.totalorder %s14, 1
      %p164 = por %p162, %p163
      %p165 = scmp.ne.s32.totalorder %s157, %s160
      %p166 = scmp.eq.s32.totalorder %s14, 0
      %p167 = por %p165, %p166
      %p168 = scmp.ne.s32.totalorder %s157, %s160
      %p169 = scmp.eq.s32.totalorder %s19, 1
      %p170 = por %p168, %p169
      %p171 = scmp.ne.s32.totalorder %s160, %s161
      %p172 = scmp.eq.s32.totalorder %s19, 0
      %p173 = por %p171, %p172
      %p174 = scmp.ne.s32.totalorder %s160, %s161
      %p175 = scmp.eq.s32.totalorder %s20, 1
      %p176 = por %p174, %p175
      %p178 = scmp.ne.s32.totalorder %s161, %s177
      %p179 = scmp.eq.s32.totalorder %s20, 0
      %p180 = por %p178, %p179
      %p181 = scmp.le.s32.totalorder 1, %s14
      %p182 = scmp.lt.s32.totalorder %s14, 3
      %p183 = pnand %p181, %p182
      %p184 = pneg %p183
      // Predicated region
      $region9: #{tpu_custom_call.1} parent=5 // pred_check
        _
      $region10: #{tpu_custom_call.1} parent=5 // pred_check_branch
        %186 = sbr.rel (%p183) target = $region12
      $region11: #{tpu_custom_call.1} parent=5 // pred_region
        %s187 = ssub.s32 %s14, 1
        // Predicated region
        $region13: #{tpu_custom_call.1} parent=11 // pred_check
          %p188 = pneg %p103
        $region14: #{tpu_custom_call.1} parent=11 // pred_check_branch
          %190 = sbr.rel (%p188) target = $region16
        $region15: #{tpu_custom_call.1} parent=11 // pred_region
          _
        $region16: #{tpu_custom_call.1} parent=11 // pred_fallthru
          _
        // Predicated region
        $region17: #{tpu_custom_call.1} parent=11 // pred_check
          %p191 = pneg %p124
        $region18: #{tpu_custom_call.1} parent=11 // pred_check_branch
          %193 = sbr.rel (%p191) target = $region20
        $region19: #{tpu_custom_call.1} parent=11 // pred_region
          _
        $region20: #{tpu_custom_call.1} parent=11 // pred_fallthru
          _
        // Predicated region
        $region21: #{tpu_custom_call.1} parent=11 // pred_check
          %p194 = pneg %p145
        $region22: #{tpu_custom_call.1} parent=11 // pred_check_branch
          %196 = sbr.rel (%p194) target = $region24
        $region23: #{tpu_custom_call.1} parent=11 // pred_region
          _
        $region24: #{tpu_custom_call.1} parent=11 // pred_fallthru
          _
      $region12: #{tpu_custom_call.1} parent=5 // pred_fallthru
        _
      %p197 = scmp.lt.s32.totalorder %s14, 2
      // Predicated region
      $region25: #{tpu_custom_call.1} parent=5 // pred_check
        %p198 = pneg %p197
      $region26: #{tpu_custom_call.1} parent=5 // pred_check_branch
        %200 = sbr.rel (%p198) target = $region28
      $region27: #{tpu_custom_call.1} parent=5 // pred_region
        // Predicated region
        $region29: #{tpu_custom_call.1} parent=27 // pred_check
          %p201 = pneg %p48
        $region30: #{tpu_custom_call.1} parent=27 // pred_check_branch
          %203 = sbr.rel (%p201) target = $region32
        $region31: #{tpu_custom_call.1} parent=27 // pred_region
          %s204 = smul.u32 2, %s22
          %p205 = scmp.lt.s32.totalorder %s21, 1
          %s206 = scalar_select %p205, %s21, 1
          %p207 = scmp.lt.s32.totalorder %s204, 1
          %s208 = scalar_select %p207, %s204, 1
          %s209 = smul.addr %s206, 2
          %s210 = sadd.s32 %s208, %s209
          %s211 = smul.addr %s210, 2
          %s212 = scalar_lea.vmem %s0, %s211
          %s213 = smul.u32 2, %s22
        $region32: #{tpu_custom_call.1} parent=27 // pred_fallthru
          _
        // Predicated region
        $region33: #{tpu_custom_call.1} parent=27 // pred_check
          %p214 = pneg %p76
        $region34: #{tpu_custom_call.1} parent=27 // pred_check_branch
          %216 = sbr.rel (%p214) target = $region36
        $region35: #{tpu_custom_call.1} parent=27 // pred_region
          %s217 = smul.u32 2, %s22
          %p218 = scmp.lt.s32.totalorder %s21, 1
          %s219 = scalar_select %p218, %s21, 1
          %p220 = scmp.lt.s32.totalorder %s217, 1
          %s221 = scalar_select %p220, %s217, 1
          %s222 = smul.addr %s219, 2
          %s223 = sadd.s32 %s221, %s222
          %s224 = scalar_lea.vmem %s1, %s223
          %s225 = smul.u32 2, %s22
        $region36: #{tpu_custom_call.1} parent=27 // pred_fallthru
          _
      $region28: #{tpu_custom_call.1} parent=5 // pred_fallthru
        _
      %p226 = scmp.le.s32.totalorder 1, %s14
      %p227 = scmp.lt.s32.totalorder %s14, 3
      %p228 = pnand %p226, %p227
      %p229 = pneg %p228
      // Predicated region
      $region37: #{tpu_custom_call.1} parent=5 // pred_check
        _
      $region38: #{tpu_custom_call.1} parent=5 // pred_check_branch
        %231 = sbr.rel (%p228) target = $region40
      $region39: #{tpu_custom_call.1} parent=5 // pred_region
        %s232 = ssub.s32 %s14, 1
        %s233 = smul.u32 2, %s24
        %p234 = scmp.lt.s32.totalorder %s23, 1
        %s235 = scalar_select %p234, %s23, 1
        %p236 = scmp.lt.s32.totalorder %s233, 1
        %s237 = scalar_select %p236, %s233, 1
        %s238 = smul.addr %s235, 2
        %s239 = sadd.s32 %s237, %s238
        %s240 = smul.addr %s239, 2
        %s241 = scalar_lea.vmem %s0, %s240
        %p242 = pneg %p54
        %p243 = pneg %p51
        %s244 = smul.u32 2, %s24
        %p245 = scmp.lt.s32.totalorder %s23, 1
        %s246 = scalar_select %p245, %s23, 1
        %p247 = scmp.lt.s32.totalorder %s244, 1
        %s248 = scalar_select %p247, %s244, 1
        %s249 = smul.addr %s246, 2
        %s250 = sadd.s32 %s248, %s249
        %s251 = scalar_lea.vmem %s1, %s250
        %p252 = pneg %p82
        %p253 = pneg %p79
        %p254 = pneg %p103
        %p255 = pneg %p100
        %p256 = pneg %p124
        %p257 = pneg %p121
        %p258 = pneg %p145
        %p259 = pneg %p142
        %p260 = pneg %p173
        %p261 = pneg %p170
        %s262 = sand.u32 %s160, 1
        %s263 = scalar_lea.sflag [#allocation3], %s262
        %s264 = sand.u32 %s160, 1
        %s265 = smul.addr %s264, 8
        %s266 = scalar_lea.vmem [#allocation2], %s265
        %s267 = smul.u32 2, %s24
        %p268 = scmp.lt.s32.totalorder %s23, 1
        %s269 = scalar_select %p268, %s23, 1
        %p270 = scmp.lt.s32.totalorder %s267, 1
        %s271 = scalar_select %p270, %s267, 1
        %s272 = smul.addr %s269, 2
        %s273 = sadd.s32 %s271, %s272
        %s274 = smul.addr %s273, 2
        %s275 = scalar_lea.vmem %s0, %s274
        %s276 = smul.u32 2, %s24
        %s277 = smul.u32 2, %s24
        %p278 = scmp.lt.s32.totalorder %s23, 1
        %s279 = scalar_select %p278, %s23, 1
        %p280 = scmp.lt.s32.totalorder %s277, 1
        %s281 = scalar_select %p280, %s277, 1
        %s282 = smul.addr %s279, 2
        %s283 = sadd.s32 %s281, %s282
        %s284 = scalar_lea.vmem %s1, %s283
        %s285 = smul.u32 2, %s24
        %s286 = smul.u32 2, %s24
        %v288 = vld [vmem:[%s2] sm:$0xf]
        %v289 = vld [vmem:[%s275] sm:$0xf]
        %v292 = vunpack.c.l.s4 1983009808
        %v293 = vunpack.c.0.s8 %v292
        %v294 = vlaneseq
        %v295 = vshrl.u32 %v294, 7
        %v296 = vsub.s32 %v293, %v295
        %v297 = vrot.slane %v289, %v296
        %v298 = vcombine.high %v297, %v297
        %v301 = vpack.c.bf16 %v297, %v297
        %v302 = vpack.c.bf16 %v298, %v298
        %v303 = vld [vmem:[%s3] sm:$0xf]
        %v304 = vld [vmem:[%s284] sm:$0x3]
        %v307 = vunpack.c.l.s4 1966171168
        %v308 = vunpack.c.0.s8 %v307
        %v309 = vlaneseq
        %v310 = vshrl.u32 %v309, 7
        %v311 = vsub.s32 %v308, %v310
        %v312 = vrot.slane %v304, %v311
        %v313 = vcombine.high %v312, %v312
        %v315 = vunpack.c.l.s4 1966171168
        %v316 = vunpack.c.0.s8 %v315
        %v317 = vlaneseq
        %v318 = vshrl.u32 %v317, 7
        %v319 = vsub.s32 %v316, %v318
        %v320 = vrot.slane %v312, %v319
        %v322 = vunpack.c.l.s4 1966171168
        %v323 = vunpack.c.0.s8 %v322
        %v324 = vlaneseq
        %v325 = vshrl.u32 %v324, 7
        %v326 = vsub.s32 %v323, %v325
        %v327 = vrot.slane %v313, %v326
        %vm328 = vcmask 15360
        %v330 = vsel %vm328, %v303, 0
        %vm332 = vcmask 1040384
        %v334 = vsel %vm332, %v320, 0
        %v337 = vsel %vm332, %v327, 0
        %339 = vmatprep.subr.bf16.mxu0 %v337
        %340 = vmatpush1.bf16.msra.mxu0 %v334
        %341 = vmatprep.subr.bf16.mxu0 0
        %342 = vmatpush1.bf16.msra.mxu0 0
        %343 = vmatprep.subr.bf16.mxu0 0
        %344 = vmatpush1.bf16.msra.mxu0 0
        %345 = vmatprep.subr.bf16.mxu0 0
        %346 = vmatpush1.bf16.msra.mxu0 0
        %347 = vmatprep.subr.bf16.mxu0 0
        %348 = vmatpush1.bf16.msra.mxu0 0
        %349 = vmatprep.subr.bf16.mxu0 0
        %350 = vmatpush1.bf16.msra.mxu0 0
        %351 = vmatprep.subr.bf16.mxu0 0
        %352 = vmatpush1.bf16.msra.mxu0 0
        %353 = vmatprep.subr.bf16.mxu0 0
        %354 = vmatpush1.bf16.msra.mxu0 0
        %355 = vmatprep.subr.bf16.mxu0 0
        %356 = vmatpush1.bf16.msra.mxu0 0
        %357 = vmatprep.subr.bf16.mxu0 0
        %358 = vmatpush1.bf16.msra.mxu0 0
        %359 = vmatprep.subr.bf16.mxu0 0
        %360 = vmatpush1.bf16.msra.mxu0 0
        %361 = vmatprep.subr.bf16.mxu0 0
        %362 = vmatpush1.bf16.msra.mxu0 0
        %363 = vmatprep.subr.bf16.mxu0 0
        %364 = vmatpush1.bf16.msra.mxu0 0
        %365 = vmatprep.subr.bf16.mxu0 0
        %366 = vmatpush1.bf16.msra.mxu0 0
        %367 = vmatprep.subr.bf16.mxu0 0
        %368 = vmatpush1.bf16.msra.mxu0 0
        %369 = vmatprep.subr.bf16.mxu0 0
        %370 = vmatpush1.bf16.msra.mxu0 0
        %371 = vmatprep.mubr.bf16.mxu0 0
        %372 = vmatmul.mubr.bf16.gmra.mrb[0].mxu0 %v330
        %v373 = vpop.f32.mrb[0].mxu0
        %v374 = vadd.f32 0.0, %v373
        %v375 = vpop.f32.mrb[0].mxu0
        %v376 = vadd.f32 0.0, %v375
        %v377 = vpop.f32.mrb[0].mxu0
        %v378 = vpop.f32.mrb[0].mxu0
        %379 = vdwg.mxu0
        %v381 = vsel %vm328, %v288, 0
        %v384 = vsel %vm332, %v301, 0
        %v387 = vsel %vm332, %v302, 0
        %389 = vmatprep.subr.bf16.mxu0 %v387
        %390 = vmatpush1.bf16.msra.mxu0 %v384
        %391 = vmatprep.subr.bf16.mxu0 0
        %392 = vmatpush1.bf16.msra.mxu0 0
        %393 = vmatprep.subr.bf16.mxu0 0
        %394 = vmatpush1.bf16.msra.mxu0 0
        %395 = vmatprep.subr.bf16.mxu0 0
        %396 = vmatpush1.bf16.msra.mxu0 0
        %397 = vmatprep.subr.bf16.mxu0 0
        %398 = vmatpush1.bf16.msra.mxu0 0
        %399 = vmatprep.subr.bf16.mxu0 0
        %400 = vmatpush1.bf16.msra.mxu0 0
        %401 = vmatprep.subr.bf16.mxu0 0
        %402 = vmatpush1.bf16.msra.mxu0 0
        %403 = vmatprep.subr.bf16.mxu0 0
        %404 = vmatpush1.bf16.msra.mxu0 0
        %405 = vmatprep.subr.bf16.mxu0 0
        %406 = vmatpush1.bf16.msra.mxu0 0
        %407 = vmatprep.subr.bf16.mxu0 0
        %408 = vmatpush1.bf16.msra.mxu0 0
        %409 = vmatprep.subr.bf16.mxu0 0
        %410 = vmatpush1.bf16.msra.mxu0 0
        %411 = vmatprep.subr.bf16.mxu0 0
        %412 = vmatpush1.bf16.msra.mxu0 0
        %413 = vmatprep.subr.bf16.mxu0 0
        %414 = vmatpush1.bf16.msra.mxu0 0
        %415 = vmatprep.subr.bf16.mxu0 0
        %416 = vmatpush1.bf16.msra.mxu0 0
        %417 = vmatprep.subr.bf16.mxu0 0
        %418 = vmatpush1.bf16.msra.mxu0 0
        %419 = vmatprep.subr.bf16.mxu0 0
        %420 = vmatpush1.bf16.msra.mxu0 0
        %421 = vmatprep.mubr.bf16.mxu0 0
        %422 = vmatmul.mubr.bf16.gmra.mrb[0].mxu0 %v381
        %v423 = vpop.f32.mrb[0].mxu0
        %v424 = vadd.f32 %v374, %v423
        %v425 = vpop.f32.mrb[0].mxu0
        %v426 = vadd.f32 %v376, %v425
        %v427 = vpop.f32.mrb[0].mxu0
        %v428 = vpop.f32.mrb[0].mxu0
        %429 = vdwg.mxu0
        %v430 = vld [vmem:[%s4] sm:$0xff]
        %432 = vset.pattern.permute.xlu0 0
        %433 = vperm.xlu0 %432, %v430
        %v434 = vpop.permute.xlu0 %433
        %v436 = vadd.f32 %v424, %v434
        %v437 = vadd.f32 %v426, %v434
        %v438 = vpack.c.bf16 %v436, %v436
        %v439 = vpack.c.bf16 %v437, %v437
        %v442 = vunpack.c.l.b16 %v438
        %v443 = vunpack.c.l.b16 %v439
        %v444 = vpack.c.b16 %v443, %v442
        %446 = vst [vmem:[%s266] sm:$0xff] %v444
        %s447 = sand.u32 %s160, 1
        %s448 = scalar_lea.sflag [#allocation3], %s447
        %s449 = sand.u32 %s160, 1
        %s450 = smul.addr %s449, 8
        %s451 = scalar_lea.vmem [#allocation2], %s450
        // Predicated region
        $region41: #{tpu_custom_call.1} parent=39 // pred_check
          %p452 = pneg %p170
        $region42: #{tpu_custom_call.1} parent=39 // pred_check_branch
          %454 = sbr.rel (%p452) target = $region44
        $region43: #{tpu_custom_call.1} parent=39 // pred_region
          %s455 = smul.u32 2, %s24
          %s457 = ssub.s32 128, 128
          %458 = vsyncadd %s448, %s457
          %s459 = smul.addr %s23, 2
          %s460 = sadd.s32 %s455, %s459
          %s461 = smul.addr %s460, 64
          %s462 = scalar_lea.hbm %s5, %s461
          %s464 = sshll.u32 %s451, 4
          %s465 = int_to_ptr.vmem [resolvable:$true] %s464
          %467 = dma.vmem_to_hbm [thread:$0]  %s465, 128, %s462, %s448
        $region44: #{tpu_custom_call.1} parent=39 // pred_fallthru
          _
      $region40: #{tpu_custom_call.1} parent=5 // pred_fallthru
        _
      %p468 = scmp.le.s32.totalorder 2, %s14
      // Predicated region
      $region45: #{tpu_custom_call.1} parent=5 // pred_check
        %p469 = pneg %p468
      $region46: #{tpu_custom_call.1} parent=5 // pred_check_branch
        %471 = sbr.rel (%p469) target = $region48
      $region47: #{tpu_custom_call.1} parent=5 // pred_region
        %s472 = ssub.s32 %s14, 2
        // Predicated region
        $region49: #{tpu_custom_call.1} parent=47 // pred_check
          %p473 = pneg %p176
        $region50: #{tpu_custom_call.1} parent=47 // pred_check_branch
          %475 = sbr.rel (%p473) target = $region52
        $region51: #{tpu_custom_call.1} parent=47 // pred_region
          %s476 = sand.u32 %s161, 1
          %s477 = scalar_lea.sflag [#allocation3], %s476
          %s478 = sand.u32 %s161, 1
          %s479 = smul.addr %s478, 8
          %s480 = scalar_lea.vmem [#allocation2], %s479
          %481 = dma.done %s477, 128
        $region52: #{tpu_custom_call.1} parent=47 // pred_fallthru
          _
      $region48: #{tpu_custom_call.1} parent=5 // pred_fallthru
        _
    $region6: #{tpu_custom_call.1} parent=1 // loop_footer
      %s18 = sadd.s32 1, %s14
    $region7: #{tpu_custom_call.1} parent=1 // loop_footer_branch
      %13 = sbr.rel target = $region3
    $region8: #{tpu_custom_call.1} parent=1 // loop_exit
      _
    %482 = vsyncpa [#allocation3], 1
    %s483 = scalar_lea.sflag [#allocation3], 1
    %484 = vsyncpa %s483, 1

</llo_original>
